<compile_context>
chip_gen: v7x
topology: tpu7x:2x2x1
jax: 0.10.0
libtpu: 0.0.40
codegen_flags: <defaults>
</compile_context>

<pallas_src>
import functools
import math

import jax
import jax.numpy as jnp
from jax.experimental import pallas as pl
from jax.experimental.pallas import tpu as pltpu

_LANE = 128     # vreg lane width (last dim)
_ROW_ALIGN = 32 # batch-tile alignment (covers f32 / bf16 sublane packing)


def _round_up(x, m):
    return ((x + m - 1) // m) * m


def _encoder_kernel(x_ref, w0_ref, b0_ref, w1_ref, b1_ref, w2_ref, b2_ref, out_ref):
    """One batch tile: 3 x (matmul -> bias -> relu).  BN is pre-folded into w0/b0."""
    cdt = w0_ref.dtype                      # MXU operand dtype (f32 or bf16)
    h = x_ref[...].astype(cdt)              # [TM, D0p]

    h = jnp.dot(h, w0_ref[...], preferred_element_type=jnp.float32) + b0_ref[...]
    h = jnp.maximum(h, 0.0)                 # [TM, Hp], f32

    h = jnp.dot(h.astype(cdt), w1_ref[...], preferred_element_type=jnp.float32) + b1_ref[...]
    h = jnp.maximum(h, 0.0)

    h = jnp.dot(h.astype(cdt), w2_ref[...], preferred_element_type=jnp.float32) + b2_ref[...]
    h = jnp.maximum(h, 0.0)

    out_ref[...] = h.astype(out_ref.dtype)


@functools.partial(jax.jit, static_argnames=("compute_dtype", "block_m"))
def encoder_forward(x, params, *, compute_dtype=jnp.float32, block_m=512):
    """x: [N, D0] float32.  params: dict from init_params (weights stored [in, out])."""
    n, d0 = x.shape
    h_dim = params["w0"].shape[1]
    eps = 1e-5

    # --- BatchNorm1d (training mode): full-batch biased stats, folded into first linear ---
    xf = x.astype(jnp.float32)
    mean = jnp.mean(xf, axis=0, keepdims=True)                     # (1, D0)
    var = jnp.mean(jnp.square(xf - mean), axis=0, keepdims=True)   # (1, D0), biased
    scale = params["gamma"] * jax.lax.rsqrt(var + eps)             # (1, D0)
    shift = params["beta"] - mean * scale                          # (1, D0)
    w0_eff = params["w0"] * jnp.transpose(scale)                   # (D0, H): per-input-row scale
    b0_eff = shift @ params["w0"] + params["b0"]                   # (1, H)

    # --- pad to lane/sublane-dense shapes ---
    d0p = _round_up(d0, _LANE)
    hp = _round_up(h_dim, _LANE)
    tm = min(_round_up(n, _ROW_ALIGN), block_m)                    # batch tile
    n_pad = _round_up(n, tm)

    def pad2(a, rows, cols, dtype):
        a = a.astype(dtype)
        return jnp.pad(a, ((0, rows - a.shape[0]), (0, cols - a.shape[1])))

    # Activations streamed in compute_dtype (halves x HBM bytes on the bf16 path).
    xp = pad2(xf, n_pad, d0p, compute_dtype)
    w0p = pad2(w0_eff, d0p, hp, compute_dtype)
    w1p = pad2(params["w1"], hp, hp, compute_dtype)
    w2p = pad2(params["w2"], hp, hp, compute_dtype)
    b0p = pad2(b0_eff, 1, hp, jnp.float32)                         # biases stay f32
    b1p = pad2(params["b1"], 1, hp, jnp.float32)
    b2p = pad2(params["b2"], 1, hp, jnp.float32)

    grid = (n_pad // tm,)

    def resident(shape):
        # weights/biases: same block for every grid step -> stay resident in VMEM
        return pl.BlockSpec(shape, lambda i: (0, 0))

    out = pl.pallas_call(
        _encoder_kernel,
        out_shape=jax.ShapeDtypeStruct((n_pad, hp), jnp.float32),
        grid=grid,
        in_specs=[
            pl.BlockSpec((tm, d0p), lambda i: (i, 0)),             # x: streamed batch tiles
            resident((d0p, hp)), resident((1, hp)),                # w0_eff, b0_eff
            resident((hp, hp)), resident((1, hp)),                 # w1, b1
            resident((hp, hp)), resident((1, hp)),                 # w2, b2
        ],
        out_specs=pl.BlockSpec((tm, hp), lambda i: (i, 0)),        # lane-dense output tile
        compiler_params=pltpu.CompilerParams(
            dimension_semantics=("parallel",),                     # megacore: split batch tiles
            vmem_limit_bytes=32 * 1024 * 1024,                     # safe on v5e/v6e/v7x
        ),
    )(xp, w0p, b0p, w1p, b1p, w2p, b2p)

    return out[:n, :h_dim]


def init_params(key, d0, h):
    """Deterministic synthetic parameters mimicking PyTorch default inits."""
    ks = jax.random.split(key, 6)

    def linear(kw, kb, fan_in, fan_out):
        bound = 1.0 / math.sqrt(fan_in)
        # PyTorch stores W as [out, in]; we keep it transposed [in, out].
        w = jax.random.uniform(kw, (fan_in, fan_out), jnp.float32, -bound, bound)
        b = jax.random.uniform(kb, (1, fan_out), jnp.float32, -bound, bound)
        return w, b

    w0, b0 = linear(ks[0], ks[1], d0, h)   # first: Linear(D0 -> H)
    w1, b1 = linear(ks[2], ks[3], h, h)    # hidden layer_1
    w2, b2 = linear(ks[4], ks[5], h, h)    # hidden layer_2

    return {
        "gamma": jnp.ones((1, d0), jnp.float32),   # BatchNorm1d weight
        "beta": jnp.zeros((1, d0), jnp.float32),   # BatchNorm1d bias
        "w0": w0, "b0": b0,
        "w1": w1, "b1": b1,
        "w2": w2, "b2": b2,
    }


if __name__ == "__main__":
    N, D0, H = 8, 16, 32                           # config.model.dims = [16, 32, 32, 32, 32]
    key = jax.random.PRNGKey(0)
    kx, kp = jax.random.split(key)
    x = jax.random.normal(kx, (N, D0), jnp.float32)
    params = init_params(kp, D0, H)

    # pure-JAX reference (training-mode BN with biased variance), all f32
    mean = jnp.mean(x, axis=0, keepdims=True)
    var = jnp.mean((x - mean) ** 2, axis=0, keepdims=True)
    ref = (x - mean) / jnp.sqrt(var + 1e-5) * params["gamma"] + params["beta"]
    ref = jnp.maximum(ref @ params["w0"] + params["b0"], 0.0)
    ref = jnp.maximum(ref @ params["w1"] + params["b1"], 0.0)
    ref = jnp.maximum(ref @ params["w2"] + params["b2"], 0.0)

    # f32 MXU operands: tight check (v5e-friendly default path)
    out_f32 = encoder_forward(x, params, compute_dtype=jnp.float32)
    jax.block_until_ready(out_f32)
    assert out_f32.shape == (N, H)
    assert jnp.allclose(out_f32, ref, atol=1e-4, rtol=1e-4)

    # bf16 MXU operands, f32 accumulate: v6e/v7x fast path (loose tolerance)
    out_bf16 = encoder_forward(x, params, compute_dtype=jnp.bfloat16)
    jax.block_until_ready(out_bf16)
    assert out_bf16.shape == (N, H)
    assert jnp.allclose(out_bf16, ref, atol=1e-1, rtol=1e-1)

    print("KERNEL_OK")
</pallas_src>

<mosaic_0001>
module attributes {stable_mosaic.version = 11 : i64} {
  func.func @_encoder_kernel(%arg0: i32, %arg1: memref<32x128xf32, #tpu.memory_space<vmem>>, %arg2: memref<128x128xf32, #tpu.memory_space<vmem>>, %arg3: memref<1x128xf32, #tpu.memory_space<vmem>>, %arg4: memref<128x128xf32, #tpu.memory_space<vmem>>, %arg5: memref<1x128xf32, #tpu.memory_space<vmem>>, %arg6: memref<128x128xf32, #tpu.memory_space<vmem>>, %arg7: memref<1x128xf32, #tpu.memory_space<vmem>>, %arg8: memref<32x128xf32, #tpu.memory_space<vmem>>) attributes {dimension_semantics = [#tpu.dimension_semantics<parallel>], iteration_bounds = array<i64: 1>, scalar_prefetch = 0 : i64, scratch_operands = 0 : i64, tpu.core_type = #tpu.core_type<tc>, window_params = [{transform_indices = @transform_0, window_bounds = array<i64: 32, 128>}, {pipeline_mode = #tpu.pipeline_mode<synchronous>, transform_indices = @transform_1, window_bounds = array<i64: 128, 128>}, {pipeline_mode = #tpu.pipeline_mode<synchronous>, transform_indices = @transform_2, window_bounds = array<i64: 1, 128>}, {pipeline_mode = #tpu.pipeline_mode<synchronous>, transform_indices = @transform_3, window_bounds = array<i64: 128, 128>}, {pipeline_mode = #tpu.pipeline_mode<synchronous>, transform_indices = @transform_4, window_bounds = array<i64: 1, 128>}, {pipeline_mode = #tpu.pipeline_mode<synchronous>, transform_indices = @transform_5, window_bounds = array<i64: 128, 128>}, {pipeline_mode = #tpu.pipeline_mode<synchronous>, transform_indices = @transform_6, window_bounds = array<i64: 1, 128>}, {transform_indices = @transform_7, window_bounds = array<i64: 32, 128>}]} {
    %c0 = arith.constant 0 : index
    %c0_0 = arith.constant 0 : index
    %0 = vector.load %arg1[%c0, %c0_0] : memref<32x128xf32, #tpu.memory_space<vmem>>, vector<32x128xf32>
    %c0_1 = arith.constant 0 : index
    %c0_2 = arith.constant 0 : index
    %1 = vector.load %arg2[%c0_1, %c0_2] : memref<128x128xf32, #tpu.memory_space<vmem>>, vector<128x128xf32>
    %cst = arith.constant dense<0.000000e+00> : vector<32x128xf32>
    %2 = tpu.matmul %0, %1, %cst {dimension_numbers = #tpu.dot_dimension_numbers<[1], [0], [0], [1], [0, 0, 1, 1], [], []>} : vector<32x128xf32>, vector<128x128xf32>, vector<32x128xf32> -> vector<32x128xf32>
    %c0_3 = arith.constant 0 : index
    %c0_4 = arith.constant 0 : index
    %3 = vector.load %arg3[%c0_3, %c0_4] : memref<1x128xf32, #tpu.memory_space<vmem>>, vector<1x128xf32>
    %4 = vector.broadcast %3 : vector<1x128xf32> to vector<32x128xf32>
    %5 = arith.addf %2, %4 : vector<32x128xf32>
    %cst_5 = arith.constant 0.000000e+00 : f32
    %6 = vector.broadcast %cst_5 : f32 to vector<32x128xf32>
    %7 = arith.maximumf %5, %6 : vector<32x128xf32>
    %c0_6 = arith.constant 0 : index
    %c0_7 = arith.constant 0 : index
    %8 = vector.load %arg4[%c0_6, %c0_7] : memref<128x128xf32, #tpu.memory_space<vmem>>, vector<128x128xf32>
    %cst_8 = arith.constant dense<0.000000e+00> : vector<32x128xf32>
    %9 = tpu.matmul %7, %8, %cst_8 {dimension_numbers = #tpu.dot_dimension_numbers<[1], [0], [0], [1], [0, 0, 1, 1], [], []>} : vector<32x128xf32>, vector<128x128xf32>, vector<32x128xf32> -> vector<32x128xf32>
    %c0_9 = arith.constant 0 : index
    %c0_10 = arith.constant 0 : index
    %10 = vector.load %arg5[%c0_9, %c0_10] : memref<1x128xf32, #tpu.memory_space<vmem>>, vector<1x128xf32>
    %11 = vector.broadcast %10 : vector<1x128xf32> to vector<32x128xf32>
    %12 = arith.addf %9, %11 : vector<32x128xf32>
    %cst_11 = arith.constant 0.000000e+00 : f32
    %13 = vector.broadcast %cst_11 : f32 to vector<32x128xf32>
    %14 = arith.maximumf %12, %13 : vector<32x128xf32>
    %c0_12 = arith.constant 0 : index
    %c0_13 = arith.constant 0 : index
    %15 = vector.load %arg6[%c0_12, %c0_13] : memref<128x128xf32, #tpu.memory_space<vmem>>, vector<128x128xf32>
    %cst_14 = arith.constant dense<0.000000e+00> : vector<32x128xf32>
    %16 = tpu.matmul %14, %15, %cst_14 {dimension_numbers = #tpu.dot_dimension_numbers<[1], [0], [0], [1], [0, 0, 1, 1], [], []>} : vector<32x128xf32>, vector<128x128xf32>, vector<32x128xf32> -> vector<32x128xf32>
    %c0_15 = arith.constant 0 : index
    %c0_16 = arith.constant 0 : index
    %17 = vector.load %arg7[%c0_15, %c0_16] : memref<1x128xf32, #tpu.memory_space<vmem>>, vector<1x128xf32>
    %18 = vector.broadcast %17 : vector<1x128xf32> to vector<32x128xf32>
    %19 = arith.addf %16, %18 : vector<32x128xf32>
    %cst_17 = arith.constant 0.000000e+00 : f32
    %20 = vector.broadcast %cst_17 : f32 to vector<32x128xf32>
    %21 = arith.maximumf %19, %20 : vector<32x128xf32>
    %c0_18 = arith.constant 0 : index
    %c0_19 = arith.constant 0 : index
    %22 = vector.load %arg8[%c0_18, %c0_19] : memref<32x128xf32, #tpu.memory_space<vmem>>, vector<32x128xf32>
    tpu.vector_store %arg8[%c0_18, %c0_19], %21 {strides = array<i32>} : memref<32x128xf32, #tpu.memory_space<vmem>>, vector<32x128xf32>,
    return
  }
  func.func @transform_0(%arg0: i32) -> (i32, i32) {
    %c0_i32 = arith.constant 0 : i32
    %c0_i32_0 = arith.constant 0 : i32
    return %arg0, %c0_i32 : i32, i32
  }
  func.func @transform_1(%arg0: i32) -> (i32, i32) {
    %c0_i32 = arith.constant 0 : i32
    %c0_i32_0 = arith.constant 0 : i32
    %c0_i32_1 = arith.constant 0 : i32
    return %c0_i32, %c0_i32_0 : i32, i32
  }
  func.func @transform_2(%arg0: i32) -> (i32, i32) {
    %c0_i32 = arith.constant 0 : i32
    %c0_i32_0 = arith.constant 0 : i32
    %c0_i32_1 = arith.constant 0 : i32
    return %c0_i32, %c0_i32_0 : i32, i32
  }
  func.func @transform_3(%arg0: i32) -> (i32, i32) {
    %c0_i32 = arith.constant 0 : i32
    %c0_i32_0 = arith.constant 0 : i32
    %c0_i32_1 = arith.constant 0 : i32
    return %c0_i32, %c0_i32_0 : i32, i32
  }
  func.func @transform_4(%arg0: i32) -> (i32, i32) {
    %c0_i32 = arith.constant 0 : i32
    %c0_i32_0 = arith.constant 0 : i32
    %c0_i32_1 = arith.constant 0 : i32
    return %c0_i32, %c0_i32_0 : i32, i32
  }
  func.func @transform_5(%arg0: i32) -> (i32, i32) {
    %c0_i32 = arith.constant 0 : i32
    %c0_i32_0 = arith.constant 0 : i32
    %c0_i32_1 = arith.constant 0 : i32
    return %c0_i32, %c0_i32_0 : i32, i32
  }
  func.func @transform_6(%arg0: i32) -> (i32, i32) {
    %c0_i32 = arith.constant 0 : i32
    %c0_i32_0 = arith.constant 0 : i32
    %c0_i32_1 = arith.constant 0 : i32
    return %c0_i32, %c0_i32_0 : i32, i32
  }
  func.func @transform_7(%arg0: i32) -> (i32, i32) {
    %c0_i32 = arith.constant 0 : i32
    %c0_i32_0 = arith.constant 0 : i32
    return %arg0, %c0_i32 : i32, i32
  }
}

</mosaic_0001>

<llo_original>
// kernel: encoder_forward.1
$region0: #{encoder_forward.1}
  #allocation0 [shape = 'u32[]', space=smem, size = 0x4, offset = 0x4, fixed_abs, tag = 'smem constant byte address 0x4 - core index']
  #allocation1 [shape = 'u32[144,128]{1,0:T(1,128)}', space=vmem, size = 0x12000, scoped, tag = 'internal scratch']
  %s0 = inlined_call_operand.vmem [shape: f32[32,128], index: 0, kind: input, shape index: {}]
  %s1 = inlined_call_operand.vmem [shape: f32[128,128], index: 1, kind: input, shape index: {}]
  %s2 = inlined_call_operand.vmem [shape: f32[1,128], index: 2, kind: input, shape index: {}]
  %s3 = inlined_call_operand.vmem [shape: f32[128,128], index: 3, kind: input, shape index: {}]
  %s4 = inlined_call_operand.vmem [shape: f32[1,128], index: 4, kind: input, shape index: {}]
  %s5 = inlined_call_operand.vmem [shape: f32[128,128], index: 5, kind: input, shape index: {}]
  %s6 = inlined_call_operand.vmem [shape: f32[1,128], index: 6, kind: input, shape index: {}]
  %s7 = inlined_call_operand.vmem [shape: f32[32,128], index: 7, kind: output, shape index: {}]
  %s8 = sld [smem:[#allocation0]]
  $region38: #{encoder_forward.1} parent=0
    _
  %s10 = ssub.s32 1, %s8
  %s11 = scalar_select 0, %s10, %s8
  // Predicated region
  $region2: #{encoder_forward.1} parent=0 // pred_check
    _
  $region3: #{encoder_forward.1} parent=0 // pred_check_branch
    %13 = sbr.rel (0) target = $region5
  $region4: #{encoder_forward.1} parent=0 // pred_region
    _
  $region5: #{encoder_forward.1} parent=0 // pred_fallthru
    _
  // Predicated region
  $region6: #{encoder_forward.1} parent=0 // pred_check
    _
  $region7: #{encoder_forward.1} parent=0 // pred_check_branch
    %15 = sbr.rel (0) target = $region9
  $region8: #{encoder_forward.1} parent=0 // pred_region
    _
  $region9: #{encoder_forward.1} parent=0 // pred_fallthru
    _
  // Predicated region
  $region10: #{encoder_forward.1} parent=0 // pred_check
    _
  $region11: #{encoder_forward.1} parent=0 // pred_check_branch
    %17 = sbr.rel (0) target = $region13
  $region12: #{encoder_forward.1} parent=0 // pred_region
    _
  $region13: #{encoder_forward.1} parent=0 // pred_fallthru
    _
  // Predicated region
  $region14: #{encoder_forward.1} parent=0 // pred_check
    _
  $region15: #{encoder_forward.1} parent=0 // pred_check_branch
    %19 = sbr.rel (0) target = $region17
  $region16: #{encoder_forward.1} parent=0 // pred_region
    _
  $region17: #{encoder_forward.1} parent=0 // pred_fallthru
    _
  // Predicated region
  $region18: #{encoder_forward.1} parent=0 // pred_check
    _
  $region19: #{encoder_forward.1} parent=0 // pred_check_branch
    %21 = sbr.rel (0) target = $region21
  $region20: #{encoder_forward.1} parent=0 // pred_region
    _
  $region21: #{encoder_forward.1} parent=0 // pred_fallthru
    _
  // Predicated region
  $region22: #{encoder_forward.1} parent=0 // pred_check
    _
  $region23: #{encoder_forward.1} parent=0 // pred_check_branch
    %23 = sbr.rel (0) target = $region25
  $region24: #{encoder_forward.1} parent=0 // pred_region
    _
  $region25: #{encoder_forward.1} parent=0 // pred_fallthru
    _
  // Predicated region
  $region26: #{encoder_forward.1} parent=0 // pred_check
    _
  $region27: #{encoder_forward.1} parent=0 // pred_check_branch
    %25 = sbr.rel (0) target = $region29
  $region28: #{encoder_forward.1} parent=0 // pred_region
    _
  $region29: #{encoder_forward.1} parent=0 // pred_fallthru
    _
  %v26 = vld [vmem:[%s0] sm:$0xff]
  %v27 = vld [vmem:[%s0 + $0x8] sm:$0xff]
  %v28 = vld [vmem:[%s0 + $0x10] sm:$0xff]
  %v29 = vld [vmem:[%s0 + $0x18] sm:$0xff]
  %v30 = vld [vmem:[%s1] sm:$0xff]
  %v31 = vld [vmem:[%s1 + $0x8] sm:$0xff]
  %v32 = vld [vmem:[%s1 + $0x10] sm:$0xff]
  %v33 = vld [vmem:[%s1 + $0x18] sm:$0xff]
  %v34 = vld [vmem:[%s1 + $0x20] sm:$0xff]
  %v35 = vld [vmem:[%s1 + $0x28] sm:$0xff]
  %v36 = vld [vmem:[%s1 + $0x30] sm:$0xff]
  %v37 = vld [vmem:[%s1 + $0x38] sm:$0xff]
  %v38 = vld [vmem:[%s1 + $0x40] sm:$0xff]
  %v39 = vld [vmem:[%s1 + $0x48] sm:$0xff]
  %v40 = vld [vmem:[%s1 + $0x50] sm:$0xff]
  %v41 = vld [vmem:[%s1 + $0x58] sm:$0xff]
  %v42 = vld [vmem:[%s1 + $0x60] sm:$0xff]
  %v43 = vld [vmem:[%s1 + $0x68] sm:$0xff]
  %v44 = vld [vmem:[%s1 + $0x70] sm:$0xff]
  %v45 = vld [vmem:[%s1 + $0x78] sm:$0xff]
  %v46 = vld [vmem:[%s2] sm:$0x1]
  %v48 = vlaneseq
  %v49 = vshrl.u32 %v48, 7
  %v50 = vsub.s32 0, %v49
  %v51 = vrot.slane %v46, %v50
  %53 = vmatprep.subr.mxu0 0.0
  %54 = vmatpush1.msra.mxu0 %v30
  %55 = vmatprep.subr.mxu0 0.0
  %56 = vmatpush1.msra.mxu0 %v31
  %57 = vmatprep.subr.mxu0 0.0
  %58 = vmatpush1.msra.mxu0 %v32
  %59 = vmatprep.subr.mxu0 0.0
  %60 = vmatpush1.msra.mxu0 %v33
  %61 = vmatprep.subr.mxu0 0.0
  %62 = vmatpush1.msra.mxu0 %v34
  %63 = vmatprep.subr.mxu0 0.0
  %64 = vmatpush1.msra.mxu0 %v35
  %65 = vmatprep.subr.mxu0 0.0
  %66 = vmatpush1.msra.mxu0 %v36
  %67 = vmatprep.subr.mxu0 0.0
  %68 = vmatpush1.msra.mxu0 %v37
  %69 = vmatprep.subr.mxu0 0.0
  %70 = vmatpush1.msra.mxu0 %v38
  %71 = vmatprep.subr.mxu0 0.0
  %72 = vmatpush1.msra.mxu0 %v39
  %73 = vmatprep.subr.mxu0 0.0
  %74 = vmatpush1.msra.mxu0 %v40
  %75 = vmatprep.subr.mxu0 0.0
  %76 = vmatpush1.msra.mxu0 %v41
  %77 = vmatprep.subr.mxu0 0.0
  %78 = vmatpush1.msra.mxu0 %v42
  %79 = vmatprep.subr.mxu0 0.0
  %80 = vmatpush1.msra.mxu0 %v43
  %81 = vmatprep.subr.mxu0 0.0
  %82 = vmatpush1.msra.mxu0 %v44
  %83 = vmatprep.subr.mxu0 0.0
  %84 = vmatpush1.msra.mxu0 %v45
  %85 = vmatprep.subr.mxu0 0.0
  %86 = vmatpush1.msra.mxu0 0.0
  %87 = vmatprep.subr.mxu0 0.0
  %88 = vmatpush1.msra.mxu0 0.0
  %89 = vmatprep.subr.mxu0 0.0
  %90 = vmatpush1.msra.mxu0 0.0
  %91 = vmatprep.subr.mxu0 0.0
  %92 = vmatpush1.msra.mxu0 0.0
  %93 = vmatprep.subr.mxu0 0.0
  %94 = vmatpush1.msra.mxu0 0.0
  %95 = vmatprep.subr.mxu0 0.0
  %96 = vmatpush1.msra.mxu0 0.0
  %97 = vmatprep.subr.mxu0 0.0
  %98 = vmatpush1.msra.mxu0 0.0
  %99 = vmatprep.subr.mxu0 0.0
  %100 = vmatpush1.msra.mxu0 0.0
  %101 = vmatprep.subr.mxu0 0.0
  %102 = vmatpush1.msra.mxu0 0.0
  %103 = vmatprep.subr.mxu0 0.0
  %104 = vmatpush1.msra.mxu0 0.0
  %105 = vmatprep.subr.mxu0 0.0
  %106 = vmatpush1.msra.mxu0 0.0
  %107 = vmatprep.subr.mxu0 0.0
  %108 = vmatpush1.msra.mxu0 0.0
  %109 = vmatprep.subr.mxu0 0.0
  %110 = vmatpush1.msra.mxu0 0.0
  %111 = vmatprep.subr.mxu0 0.0
  %112 = vmatpush1.msra.mxu0 0.0
  %113 = vmatprep.subr.mxu0 0.0
  %114 = vmatpush1.msra.mxu0 0.0
  %115 = vmatprep.subr.mxu0 0.0
  %116 = vmatpush1.msra.mxu0 0.0
  %117 = vmatprep.mubr.f32.mxu0 0.0
  %118 = vmatmul.mubr.f32.gmra.mrb[0].mxu0 %v26
  %v119 = vpop.f32.mrb[0].mxu0
  %v120 = vadd.f32 %v51, %v119
  %v121 = vpop.f32.mrb[0].mxu0
  %122 = vmatprep.mubr.f32.mxu0 0.0
  %123 = vmatmul.mubr.f32.gmra.mrb[0].mxu0 %v27
  %v124 = vpop.f32.mrb[0].mxu0
  %v125 = vadd.f32 %v51, %v124
  %v126 = vpop.f32.mrb[0].mxu0
  %127 = vmatprep.mubr.f32.mxu0 0.0
  %128 = vmatmul.mubr.f32.gmra.mrb[0].mxu0 %v28
  %v129 = vpop.f32.mrb[0].mxu0
  %v130 = vadd.f32 %v51, %v129
  %v131 = vpop.f32.mrb[0].mxu0
  %132 = vmatprep.mubr.f32.mxu0 0.0
  %133 = vmatmul.mubr.f32.gmra.mrb[0].mxu0 %v29
  %v134 = vpop.f32.mrb[0].mxu0
  %v135 = vadd.f32 %v51, %v134
  %v136 = vpop.f32.mrb[0].mxu0
  %137 = vdwg.mxu0
  %v138 = vmax.f32 %v120, 0.0
  %v139 = vmax.f32 %v125, 0.0
  %v140 = vmax.f32 %v130, 0.0
  %v141 = vmax.f32 %v135, 0.0
  %v142 = vld [vmem:[%s3] sm:$0xff]
  %v143 = vld [vmem:[%s3 + $0x8] sm:$0xff]
  %v144 = vld [vmem:[%s3 + $0x10] sm:$0xff]
  %v145 = vld [vmem:[%s3 + $0x18] sm:$0xff]
  %v146 = vld [vmem:[%s3 + $0x20] sm:$0xff]
  %v147 = vld [vmem:[%s3 + $0x28] sm:$0xff]
  %v148 = vld [vmem:[%s3 + $0x30] sm:$0xff]
  %v149 = vld [vmem:[%s3 + $0x38] sm:$0xff]
  %v150 = vld [vmem:[%s3 + $0x40] sm:$0xff]
  %v151 = vld [vmem:[%s3 + $0x48] sm:$0xff]
  %v152 = vld [vmem:[%s3 + $0x50] sm:$0xff]
  %v153 = vld [vmem:[%s3 + $0x58] sm:$0xff]
  %v154 = vld [vmem:[%s3 + $0x60] sm:$0xff]
  %v155 = vld [vmem:[%s3 + $0x68] sm:$0xff]
  %v156 = vld [vmem:[%s3 + $0x70] sm:$0xff]
  %v157 = vld [vmem:[%s3 + $0x78] sm:$0xff]
  %v158 = vld [vmem:[%s4] sm:$0x1]
  %v160 = vlaneseq
  %v161 = vshrl.u32 %v160, 7
  %v162 = vsub.s32 0, %v161
  %v163 = vrot.slane %v158, %v162
  %165 = vmatprep.subr.mxu0 0.0
  %166 = vmatpush1.msra.mxu0 %v142
  %167 = vmatprep.subr.mxu0 0.0
  %168 = vmatpush1.msra.mxu0 %v143
  %169 = vmatprep.subr.mxu0 0.0
  %170 = vmatpush1.msra.mxu0 %v144
  %171 = vmatprep.subr.mxu0 0.0
  %172 = vmatpush1.msra.mxu0 %v145
  %173 = vmatprep.subr.mxu0 0.0
  %174 = vmatpush1.msra.mxu0 %v146
  %175 = vmatprep.subr.mxu0 0.0
  %176 = vmatpush1.msra.mxu0 %v147
  %177 = vmatprep.subr.mxu0 0.0
  %178 = vmatpush1.msra.mxu0 %v148
  %179 = vmatprep.subr.mxu0 0.0
  %180 = vmatpush1.msra.mxu0 %v149
  %181 = vmatprep.subr.mxu0 0.0
  %182 = vmatpush1.msra.mxu0 %v150
  %183 = vmatprep.subr.mxu0 0.0
  %184 = vmatpush1.msra.mxu0 %v151
  %185 = vmatprep.subr.mxu0 0.0
  %186 = vmatpush1.msra.mxu0 %v152
  %187 = vmatprep.subr.mxu0 0.0
  %188 = vmatpush1.msra.mxu0 %v153
  %189 = vmatprep.subr.mxu0 0.0
  %190 = vmatpush1.msra.mxu0 %v154
  %191 = vmatprep.subr.mxu0 0.0
  %192 = vmatpush1.msra.mxu0 %v155
  %193 = vmatprep.subr.mxu0 0.0
  %194 = vmatpush1.msra.mxu0 %v156
  %195 = vmatprep.subr.mxu0 0.0
  %196 = vmatpush1.msra.mxu0 %v157
  %197 = vmatprep.subr.mxu0 0.0
  %198 = vmatpush1.msra.mxu0 0.0
  %199 = vmatprep.subr.mxu0 0.0
  %200 = vmatpush1.msra.mxu0 0.0
  %201 = vmatprep.subr.mxu0 0.0
  %202 = vmatpush1.msra.mxu0 0.0
  %203 = vmatprep.subr.mxu0 0.0
  %204 = vmatpush1.msra.mxu0 0.0
  %205 = vmatprep.subr.mxu0 0.0
  %206 = vmatpush1.msra.mxu0 0.0
  %207 = vmatprep.subr.mxu0 0.0
  %208 = vmatpush1.msra.mxu0 0.0
  %209 = vmatprep.subr.mxu0 0.0
  %210 = vmatpush1.msra.mxu0 0.0
  %211 = vmatprep.subr.mxu0 0.0
  %212 = vmatpush1.msra.mxu0 0.0
  %213 = vmatprep.subr.mxu0 0.0
  %214 = vmatpush1.msra.mxu0 0.0
  %215 = vmatprep.subr.mxu0 0.0
  %216 = vmatpush1.msra.mxu0 0.0
  %217 = vmatprep.subr.mxu0 0.0
  %218 = vmatpush1.msra.mxu0 0.0
  %219 = vmatprep.subr.mxu0 0.0
  %220 = vmatpush1.msra.mxu0 0.0
  %221 = vmatprep.subr.mxu0 0.0
  %222 = vmatpush1.msra.mxu0 0.0
  %223 = vmatprep.subr.mxu0 0.0
  %224 = vmatpush1.msra.mxu0 0.0
  %225 = vmatprep.subr.mxu0 0.0
  %226 = vmatpush1.msra.mxu0 0.0
  %227 = vmatprep.subr.mxu0 0.0
  %228 = vmatpush1.msra.mxu0 0.0
  %229 = vmatprep.mubr.f32.mxu0 0.0
  %230 = vmatmul.mubr.f32.gmra.mrb[0].mxu0 %v138
  %v231 = vpop.f32.mrb[0].mxu0
  %v232 = vadd.f32 %v163, %v231
  %v233 = vpop.f32.mrb[0].mxu0
  %234 = vmatprep.mubr.f32.mxu0 0.0
  %235 = vmatmul.mubr.f32.gmra.mrb[0].mxu0 %v139
  %v236 = vpop.f32.mrb[0].mxu0
  %v237 = vadd.f32 %v163, %v236
  %v238 = vpop.f32.mrb[0].mxu0
  %239 = vmatprep.mubr.f32.mxu0 0.0
  %240 = vmatmul.mubr.f32.gmra.mrb[0].mxu0 %v140
  %v241 = vpop.f32.mrb[0].mxu0
  %v242 = vadd.f32 %v163, %v241
  %v243 = vpop.f32.mrb[0].mxu0
  %244 = vmatprep.mubr.f32.mxu0 0.0
  %245 = vmatmul.mubr.f32.gmra.mrb[0].mxu0 %v141
  %v246 = vpop.f32.mrb[0].mxu0
  %v247 = vadd.f32 %v163, %v246
  %v248 = vpop.f32.mrb[0].mxu0
  %249 = vdwg.mxu0
  %v250 = vmax.f32 %v232, 0.0
  %v251 = vmax.f32 %v237, 0.0
  %v252 = vmax.f32 %v242, 0.0
  %v253 = vmax.f32 %v247, 0.0
  %v254 = vld [vmem:[%s5] sm:$0xff]
  %v255 = vld [vmem:[%s5 + $0x8] sm:$0xff]
  %v256 = vld [vmem:[%s5 + $0x10] sm:$0xff]
  %v257 = vld [vmem:[%s5 + $0x18] sm:$0xff]
  %v258 = vld [vmem:[%s5 + $0x20] sm:$0xff]
  %v259 = vld [vmem:[%s5 + $0x28] sm:$0xff]
  %v260 = vld [vmem:[%s5 + $0x30] sm:$0xff]
  %v261 = vld [vmem:[%s5 + $0x38] sm:$0xff]
  %v262 = vld [vmem:[%s5 + $0x40] sm:$0xff]
  %v263 = vld [vmem:[%s5 + $0x48] sm:$0xff]
  %v264 = vld [vmem:[%s5 + $0x50] sm:$0xff]
  %v265 = vld [vmem:[%s5 + $0x58] sm:$0xff]
  %v266 = vld [vmem:[%s5 + $0x60] sm:$0xff]
  %v267 = vld [vmem:[%s5 + $0x68] sm:$0xff]
  %v268 = vld [vmem:[%s5 + $0x70] sm:$0xff]
  %v269 = vld [vmem:[%s5 + $0x78] sm:$0xff]
  %v270 = vld [vmem:[%s6] sm:$0x1]
  %v272 = vlaneseq
  %v273 = vshrl.u32 %v272, 7
  %v274 = vsub.s32 0, %v273
  %v275 = vrot.slane %v270, %v274
  %277 = vmatprep.subr.mxu0 0.0
  %278 = vmatpush1.msra.mxu0 %v254
  %279 = vmatprep.subr.mxu0 0.0
  %280 = vmatpush1.msra.mxu0 %v255
  %281 = vmatprep.subr.mxu0 0.0
  %282 = vmatpush1.msra.mxu0 %v256
  %283 = vmatprep.subr.mxu0 0.0
  %284 = vmatpush1.msra.mxu0 %v257
  %285 = vmatprep.subr.mxu0 0.0
  %286 = vmatpush1.msra.mxu0 %v258
  %287 = vmatprep.subr.mxu0 0.0
  %288 = vmatpush1.msra.mxu0 %v259
  %289 = vmatprep.subr.mxu0 0.0
  %290 = vmatpush1.msra.mxu0 %v260
  %291 = vmatprep.subr.mxu0 0.0
  %292 = vmatpush1.msra.mxu0 %v261
  %293 = vmatprep.subr.mxu0 0.0
  %294 = vmatpush1.msra.mxu0 %v262
  %295 = vmatprep.subr.mxu0 0.0
  %296 = vmatpush1.msra.mxu0 %v263
  %297 = vmatprep.subr.mxu0 0.0
  %298 = vmatpush1.msra.mxu0 %v264
  %299 = vmatprep.subr.mxu0 0.0
  %300 = vmatpush1.msra.mxu0 %v265
  %301 = vmatprep.subr.mxu0 0.0
  %302 = vmatpush1.msra.mxu0 %v266
  %303 = vmatprep.subr.mxu0 0.0
  %304 = vmatpush1.msra.mxu0 %v267
  %305 = vmatprep.subr.mxu0 0.0
  %306 = vmatpush1.msra.mxu0 %v268
  %307 = vmatprep.subr.mxu0 0.0
  %308 = vmatpush1.msra.mxu0 %v269
  %309 = vmatprep.subr.mxu0 0.0
  %310 = vmatpush1.msra.mxu0 0.0
  %311 = vmatprep.subr.mxu0 0.0
  %312 = vmatpush1.msra.mxu0 0.0
  %313 = vmatprep.subr.mxu0 0.0
  %314 = vmatpush1.msra.mxu0 0.0
  %315 = vmatprep.subr.mxu0 0.0
  %316 = vmatpush1.msra.mxu0 0.0
  %317 = vmatprep.subr.mxu0 0.0
  %318 = vmatpush1.msra.mxu0 0.0
  %319 = vmatprep.subr.mxu0 0.0
  %320 = vmatpush1.msra.mxu0 0.0
  %321 = vmatprep.subr.mxu0 0.0
  %322 = vmatpush1.msra.mxu0 0.0
  %323 = vmatprep.subr.mxu0 0.0
  %324 = vmatpush1.msra.mxu0 0.0
  %325 = vmatprep.subr.mxu0 0.0
  %326 = vmatpush1.msra.mxu0 0.0
  %327 = vmatprep.subr.mxu0 0.0
  %328 = vmatpush1.msra.mxu0 0.0
  %329 = vmatprep.subr.mxu0 0.0
  %330 = vmatpush1.msra.mxu0 0.0
  %331 = vmatprep.subr.mxu0 0.0
  %332 = vmatpush1.msra.mxu0 0.0
  %333 = vmatprep.subr.mxu0 0.0
  %334 = vmatpush1.msra.mxu0 0.0
  %335 = vmatprep.subr.mxu0 0.0
  %336 = vmatpush1.msra.mxu0 0.0
  %337 = vmatprep.subr.mxu0 0.0
  %338 = vmatpush1.msra.mxu0 0.0
  %339 = vmatprep.subr.mxu0 0.0
  %340 = vmatpush1.msra.mxu0 0.0
  %341 = vmatprep.mubr.f32.mxu0 0.0
  %342 = vmatmul.mubr.f32.gmra.mrb[0].mxu0 %v250
  %v343 = vpop.f32.mrb[0].mxu0
  %v344 = vadd.f32 %v275, %v343
  %v345 = vpop.f32.mrb[0].mxu0
  %346 = vmatprep.mubr.f32.mxu0 0.0
  %347 = vmatmul.mubr.f32.gmra.mrb[0].mxu0 %v251
  %v348 = vpop.f32.mrb[0].mxu0
  %v349 = vadd.f32 %v275, %v348
  %v350 = vpop.f32.mrb[0].mxu0
  %351 = vmatprep.mubr.f32.mxu0 0.0
  %352 = vmatmul.mubr.f32.gmra.mrb[0].mxu0 %v252
  %v353 = vpop.f32.mrb[0].mxu0
  %v354 = vadd.f32 %v275, %v353
  %v355 = vpop.f32.mrb[0].mxu0
  %356 = vmatprep.mubr.f32.mxu0 0.0
  %357 = vmatmul.mubr.f32.gmra.mrb[0].mxu0 %v253
  %v358 = vpop.f32.mrb[0].mxu0
  %v359 = vadd.f32 %v275, %v358
  %v360 = vpop.f32.mrb[0].mxu0
  %361 = vdwg.mxu0
  %v362 = vmax.f32 %v344, 0.0
  %v363 = vmax.f32 %v349, 0.0
  %v364 = vmax.f32 %v354, 0.0
  %v365 = vmax.f32 %v359, 0.0
  %366 = vst [vmem:[%s7] sm:$0xff] %v362
  %367 = vst [vmem:[%s7 + $0x8] sm:$0xff] %v363
  %368 = vst [vmem:[%s7 + $0x10] sm:$0xff] %v364
  %369 = vst [vmem:[%s7 + $0x18] sm:$0xff] %v365
  // Predicated region
  $region30: #{encoder_forward.1} parent=0 // pred_check
    _
  $region31: #{encoder_forward.1} parent=0 // pred_check_branch
    %371 = sbr.rel (0) target = $region33
  $region32: #{encoder_forward.1} parent=0 // pred_region
    _
  $region33: #{encoder_forward.1} parent=0 // pred_fallthru
    _
  // Predicated region
  $region34: #{encoder_forward.1} parent=0 // pred_check
    _
  $region35: #{encoder_forward.1} parent=0 // pred_check_branch
    %373 = sbr.rel (0) target = $region37
  $region36: #{encoder_forward.1} parent=0 // pred_region
    _
  $region37: #{encoder_forward.1} parent=0 // pred_fallthru
    _

</llo_original>
